<compile_context>
chip_gen: v7x
topology: tpu7x:2x2x1
jax: 0.10.0
libtpu: 0.0.40
codegen_flags: <defaults>
</compile_context>

<pallas_src>
import jax
import jax.numpy as jnp
from jax.experimental import pallas as pl
from jax.experimental.pallas import tpu as pltpu

_LANE = 128


def _round_up(n, m):
    return ((n + m - 1) // m) * m


def _xavier_uniform(key, fan_in, fan_out, dtype=jnp.float32):
    bound = (6.0 / (fan_in + fan_out)) ** 0.5
    return jax.random.uniform(key, (fan_in, fan_out), dtype=dtype,
                              minval=-bound, maxval=bound)


def _leaky_relu(x, slope=0.4):
    # Equivalent to where(x>=0, x, slope*x) for 0 < slope < 1; single vmax.
    return jnp.maximum(x, slope * x)


def _stable_sigmoid(z):
    # Numerically stable sigmoid: exp(-|z|) lands on the EUP; approx reciprocal
    # (EUP vrcp) + one Newton-Raphson step gives ~1e-8 relative error.
    ez = jnp.exp(-jnp.abs(z))
    d = 1.0 + ez
    inv = pl.reciprocal(d, approx=True)
    inv = inv * (2.0 - d * inv)          # one NR refinement
    return jnp.where(z >= 0, inv, ez * inv)


def discriminator_kernel(x_ref,
                         w1_ref, b1_ref,
                         w2_ref, b2_ref,
                         w3_ref, b3_ref,
                         w4_ref, b4_ref,
                         o_ref):
    # Layer 1: Linear + LeakyReLU(0.4)
    h = jnp.dot(x_ref[...], w1_ref[...], preferred_element_type=jnp.float32)
    h = _leaky_relu(h + b1_ref[...])
    # Layer 2
    h = jnp.dot(h, w2_ref[...], preferred_element_type=jnp.float32)
    h = _leaky_relu(h + b2_ref[...])
    # Layer 3
    h = jnp.dot(h, w3_ref[...], preferred_element_type=jnp.float32)
    h = _leaky_relu(h + b3_ref[...])
    # Layer 4: Linear + Sigmoid (output columns are NOT padded)
    z = jnp.dot(h, w4_ref[...], preferred_element_type=jnp.float32)
    z = z + b4_ref[...]
    o_ref[...] = _stable_sigmoid(z).astype(o_ref.dtype)


def init_params(key, input_size, hidden_size, output_size):
    """Raw (un-padded) params, matching the PyTorch init (xavier_uniform, zero bias)."""
    k1, k2, k3, k4 = jax.random.split(key, 4)
    w1 = _xavier_uniform(k1, input_size, hidden_size[0])
    b1 = jnp.zeros((1, hidden_size[0]), jnp.float32)
    w2 = _xavier_uniform(k2, hidden_size[0], hidden_size[1])
    b2 = jnp.zeros((1, hidden_size[1]), jnp.float32)
    w3 = _xavier_uniform(k3, hidden_size[1], hidden_size[2])
    b3 = jnp.zeros((1, hidden_size[2]), jnp.float32)
    w4 = _xavier_uniform(k4, hidden_size[2], output_size)
    b4 = jnp.zeros((1, output_size), jnp.float32)
    return ((w1, b1), (w2, b2), (w3, b3), (w4, b4))


def pad_params(params):
    """One-time lane padding of the hidden feature dims (call once, cache the result).

    Hidden widths are zero-padded to 128 lanes so intermediates are lane-dense
    (unmasked VPU/MXU work); padding is exact because padded bias lanes are 0
    (so leaky-ReLU keeps them 0) and padded weight rows are 0.  The OUTPUT
    columns are left un-padded so HBM writeback stays minimal.
    """
    (w1, b1), (w2, b2), (w3, b3), (w4, b4) = params
    d_in = w1.shape[0]
    h1, h2, h3 = w1.shape[1], w2.shape[1], w3.shape[1]
    d_out = w4.shape[1]
    h1p, h2p, h3p = (_round_up(n, _LANE) for n in (h1, h2, h3))

    def pad2(a, rows, cols):
        return jnp.pad(a, ((0, rows - a.shape[0]), (0, cols - a.shape[1])))

    return (
        (pad2(w1, d_in, h1p), pad2(b1, 1, h1p)),
        (pad2(w2, h1p, h2p), pad2(b2, 1, h2p)),
        (pad2(w3, h2p, h3p), pad2(b3, 1, h3p)),
        (pad2(w4, h3p, d_out), pad2(b4, 1, d_out)),
    )


def discriminator_forward(x, padded_params, *, batch_tile=None):
    (w1p, b1p), (w2p, b2p), (w3p, b3p), (w4p, b4p) = padded_params
    B, d_in = x.shape
    assert d_in == w1p.shape[0]
    h1p, h2p, h3p = w1p.shape[1], w2p.shape[1], w3p.shape[1]
    d_out = w4p.shape[1]

    # Tile selection: one full-batch block at small B (no per-step overhead);
    # for large B, >= 2 "parallel" steps (v7x megacore) with tiles up to 1024
    # rows to amortize the ~0.35 us/step grid overhead.
    if batch_tile is None:
        if B <= 256:
            batch_tile = B
        else:
            batch_tile = min(1024, _round_up(pl.cdiv(B, 2), 8))

    # Zero-pad the batch to a tile multiple (no hard assert on divisibility);
    # padded rows are discarded after the call.
    Bp = _round_up(B, batch_tile)
    xp = jnp.pad(x, ((0, Bp - B), (0, 0))) if Bp != B else x
    grid = (Bp // batch_tile,)

    full = lambda shape: pl.BlockSpec(shape, lambda i: (0, 0))

    out = pl.pallas_call(
        discriminator_kernel,
        out_shape=jax.ShapeDtypeStruct((Bp, d_out), jnp.float32),
        grid_spec=pltpu.PrefetchScalarGridSpec(
            num_scalar_prefetch=0,
            grid=grid,
            in_specs=[
                pl.BlockSpec((batch_tile, d_in), lambda i: (i, 0)),   # x tile
                full((d_in, h1p)), full((1, h1p)),
                full((h1p, h2p)), full((1, h2p)),
                full((h2p, h3p)), full((1, h3p)),
                full((h3p, d_out)), full((1, d_out)),
            ],
            out_specs=pl.BlockSpec((batch_tile, d_out), lambda i: (i, 0)),
        ),
        compiler_params=pltpu.CompilerParams(
            dimension_semantics=("parallel",)),
    )(xp, w1p, b1p, w2p, b2p, w3p, b3p, w4p, b4p)

    return out[:B] if Bp != B else out


def reference_forward(x, params):
    (w1, b1), (w2, b2), (w3, b3), (w4, b4) = params
    lrelu = lambda v: jnp.where(v >= 0, v, 0.4 * v)
    h = lrelu(x @ w1 + b1)
    h = lrelu(h @ w2 + b2)
    h = lrelu(h @ w3 + b3)
    return jax.nn.sigmoid(h @ w4 + b4)


if __name__ == "__main__":
    # Small shapes consistent with the module: input_size=32,
    # hidden_size=(64, 64, 32), output_size=8, batch=16.
    input_size = 32
    hidden_size = (64, 64, 32)
    output_size = 8
    batch = 16

    key = jax.random.PRNGKey(0)
    kx, kp = jax.random.split(key)
    x = jax.random.normal(kx, (batch, input_size), dtype=jnp.float32)
    params = init_params(kp, input_size, hidden_size, output_size)

    # Pad the parameters ONCE (hoisted out of the per-call path).
    padded_params = pad_params(params)
    padded_params = jax.tree_util.tree_map(jax.block_until_ready, padded_params)

    fwd = jax.jit(discriminator_forward)
    out = fwd(x, padded_params)
    out = jax.block_until_ready(out)

    ref = reference_forward(x, params)
    assert out.shape == (batch, output_size)
    assert jnp.allclose(out, ref, atol=1e-5, rtol=1e-5), "mismatch vs reference"

    print("KERNEL_OK")
</pallas_src>

<mosaic_0001>
module attributes {stable_mosaic.version = 11 : i64} {
  func.func @discriminator_kernel(%arg0: i32, %arg1: memref<16x32xf32, #tpu.memory_space<vmem>>, %arg2: memref<32x128xf32, #tpu.memory_space<vmem>>, %arg3: memref<1x128xf32, #tpu.memory_space<vmem>>, %arg4: memref<128x128xf32, #tpu.memory_space<vmem>>, %arg5: memref<1x128xf32, #tpu.memory_space<vmem>>, %arg6: memref<128x128xf32, #tpu.memory_space<vmem>>, %arg7: memref<1x128xf32, #tpu.memory_space<vmem>>, %arg8: memref<128x8xf32, #tpu.memory_space<vmem>>, %arg9: memref<1x8xf32, #tpu.memory_space<vmem>>, %arg10: memref<16x8xf32, #tpu.memory_space<vmem>>) attributes {dimension_semantics = [#tpu.dimension_semantics<parallel>], iteration_bounds = array<i64: 1>, scalar_prefetch = 0 : i64, scratch_operands = 0 : i64, tpu.core_type = #tpu.core_type<tc>, window_params = [{transform_indices = @transform_0, window_bounds = array<i64: 16, 32>}, {pipeline_mode = #tpu.pipeline_mode<synchronous>, transform_indices = @transform_1, window_bounds = array<i64: 32, 128>}, {pipeline_mode = #tpu.pipeline_mode<synchronous>, transform_indices = @transform_2, window_bounds = array<i64: 1, 128>}, {pipeline_mode = #tpu.pipeline_mode<synchronous>, transform_indices = @transform_3, window_bounds = array<i64: 128, 128>}, {pipeline_mode = #tpu.pipeline_mode<synchronous>, transform_indices = @transform_4, window_bounds = array<i64: 1, 128>}, {pipeline_mode = #tpu.pipeline_mode<synchronous>, transform_indices = @transform_5, window_bounds = array<i64: 128, 128>}, {pipeline_mode = #tpu.pipeline_mode<synchronous>, transform_indices = @transform_6, window_bounds = array<i64: 1, 128>}, {pipeline_mode = #tpu.pipeline_mode<synchronous>, transform_indices = @transform_7, window_bounds = array<i64: 128, 8>}, {pipeline_mode = #tpu.pipeline_mode<synchronous>, transform_indices = @transform_8, window_bounds = array<i64: 1, 8>}, {transform_indices = @transform_9, window_bounds = array<i64: 16, 8>}]} {
    %c0 = arith.constant 0 : index
    %c0_0 = arith.constant 0 : index
    %0 = vector.load %arg1[%c0, %c0_0] : memref<16x32xf32, #tpu.memory_space<vmem>>, vector<16x32xf32>
    %c0_1 = arith.constant 0 : index
    %c0_2 = arith.constant 0 : index
    %1 = vector.load %arg2[%c0_1, %c0_2] : memref<32x128xf32, #tpu.memory_space<vmem>>, vector<32x128xf32>
    %cst = arith.constant dense<0.000000e+00> : vector<16x128xf32>
    %2 = tpu.matmul %0, %1, %cst {dimension_numbers = #tpu.dot_dimension_numbers<[1], [0], [0], [1], [0, 0, 1, 1], [], []>} : vector<16x32xf32>, vector<32x128xf32>, vector<16x128xf32> -> vector<16x128xf32>
    %c0_3 = arith.constant 0 : index
    %c0_4 = arith.constant 0 : index
    %3 = vector.load %arg3[%c0_3, %c0_4] : memref<1x128xf32, #tpu.memory_space<vmem>>, vector<1x128xf32>
    %4 = vector.broadcast %3 : vector<1x128xf32> to vector<16x128xf32>
    %5 = arith.addf %2, %4 : vector<16x128xf32>
    %cst_5 = arith.constant 4.000000e-01 : f32
    %6 = vector.broadcast %cst_5 : f32 to vector<16x128xf32>
    %7 = arith.mulf %6, %5 : vector<16x128xf32>
    %8 = arith.maximumf %5, %7 : vector<16x128xf32>
    %c0_6 = arith.constant 0 : index
    %c0_7 = arith.constant 0 : index
    %9 = vector.load %arg4[%c0_6, %c0_7] : memref<128x128xf32, #tpu.memory_space<vmem>>, vector<128x128xf32>
    %cst_8 = arith.constant dense<0.000000e+00> : vector<16x128xf32>
    %10 = tpu.matmul %8, %9, %cst_8 {dimension_numbers = #tpu.dot_dimension_numbers<[1], [0], [0], [1], [0, 0, 1, 1], [], []>} : vector<16x128xf32>, vector<128x128xf32>, vector<16x128xf32> -> vector<16x128xf32>
    %c0_9 = arith.constant 0 : index
    %c0_10 = arith.constant 0 : index
    %11 = vector.load %arg5[%c0_9, %c0_10] : memref<1x128xf32, #tpu.memory_space<vmem>>, vector<1x128xf32>
    %12 = vector.broadcast %11 : vector<1x128xf32> to vector<16x128xf32>
    %13 = arith.addf %10, %12 : vector<16x128xf32>
    %cst_11 = arith.constant 4.000000e-01 : f32
    %14 = vector.broadcast %cst_11 : f32 to vector<16x128xf32>
    %15 = arith.mulf %14, %13 : vector<16x128xf32>
    %16 = arith.maximumf %13, %15 : vector<16x128xf32>
    %c0_12 = arith.constant 0 : index
    %c0_13 = arith.constant 0 : index
    %17 = vector.load %arg6[%c0_12, %c0_13] : memref<128x128xf32, #tpu.memory_space<vmem>>, vector<128x128xf32>
    %cst_14 = arith.constant dense<0.000000e+00> : vector<16x128xf32>
    %18 = tpu.matmul %16, %17, %cst_14 {dimension_numbers = #tpu.dot_dimension_numbers<[1], [0], [0], [1], [0, 0, 1, 1], [], []>} : vector<16x128xf32>, vector<128x128xf32>, vector<16x128xf32> -> vector<16x128xf32>
    %c0_15 = arith.constant 0 : index
    %c0_16 = arith.constant 0 : index
    %19 = vector.load %arg7[%c0_15, %c0_16] : memref<1x128xf32, #tpu.memory_space<vmem>>, vector<1x128xf32>
    %20 = vector.broadcast %19 : vector<1x128xf32> to vector<16x128xf32>
    %21 = arith.addf %18, %20 : vector<16x128xf32>
    %cst_17 = arith.constant 4.000000e-01 : f32
    %22 = vector.broadcast %cst_17 : f32 to vector<16x128xf32>
    %23 = arith.mulf %22, %21 : vector<16x128xf32>
    %24 = arith.maximumf %21, %23 : vector<16x128xf32>
    %c0_18 = arith.constant 0 : index
    %c0_19 = arith.constant 0 : index
    %25 = vector.load %arg8[%c0_18, %c0_19] : memref<128x8xf32, #tpu.memory_space<vmem>>, vector<128x8xf32>
    %cst_20 = arith.constant dense<0.000000e+00> : vector<16x8xf32>
    %26 = tpu.matmul %24, %25, %cst_20 {dimension_numbers = #tpu.dot_dimension_numbers<[1], [0], [0], [1], [0, 0, 1, 1], [], []>} : vector<16x128xf32>, vector<128x8xf32>, vector<16x8xf32> -> vector<16x8xf32>
    %c0_21 = arith.constant 0 : index
    %c0_22 = arith.constant 0 : index
    %27 = vector.load %arg9[%c0_21, %c0_22] : memref<1x8xf32, #tpu.memory_space<vmem>>, vector<1x8xf32>
    %28 = vector.broadcast %27 : vector<1x8xf32> to vector<16x8xf32>
    %29 = arith.addf %26, %28 : vector<16x8xf32>
    %30 = math.absf %29 : vector<16x8xf32>
    %cst_23 = arith.constant 0.000000e+00 : f32
    %31 = vector.broadcast %cst_23 : f32 to vector<16x8xf32>
    %32 = arith.subf %31, %30 : vector<16x8xf32>
    %33 = math.exp %32 : vector<16x8xf32>
    %cst_24 = arith.constant 1.000000e+00 : f32
    %34 = vector.broadcast %cst_24 : f32 to vector<16x8xf32>
    %35 = arith.addf %34, %33 : vector<16x8xf32>
    %36 = tpu.reciprocal %35 {approx = true} : vector<16x8xf32> -> vector<16x8xf32>
    %37 = arith.mulf %35, %36 : vector<16x8xf32>
    %cst_25 = arith.constant 2.000000e+00 : f32
    %38 = vector.broadcast %cst_25 : f32 to vector<16x8xf32>
    %39 = arith.subf %38, %37 : vector<16x8xf32>
    %40 = arith.mulf %36, %39 : vector<16x8xf32>
    %cst_26 = arith.constant 0.000000e+00 : f32
    %41 = vector.broadcast %cst_26 : f32 to vector<16x8xf32>
    %42 = arith.cmpf oge, %29, %41 : vector<16x8xf32>
    %43 = arith.mulf %33, %40 : vector<16x8xf32>
    %44 = arith.select %42, %40, %43 : vector<16x8xi1>, vector<16x8xf32>
    %c0_27 = arith.constant 0 : index
    %c0_28 = arith.constant 0 : index
    %45 = vector.load %arg10[%c0_27, %c0_28] : memref<16x8xf32, #tpu.memory_space<vmem>>, vector<16x8xf32>
    tpu.vector_store %arg10[%c0_27, %c0_28], %44 {strides = array<i32>} : memref<16x8xf32, #tpu.memory_space<vmem>>, vector<16x8xf32>,
    return
  }
  func.func @transform_0(%arg0: i32) -> (i32, i32) {
    %c0_i32 = arith.constant 0 : i32
    %c0_i32_0 = arith.constant 0 : i32
    return %arg0, %c0_i32 : i32, i32
  }
  func.func @transform_1(%arg0: i32) -> (i32, i32) {
    %c0_i32 = arith.constant 0 : i32
    %c0_i32_0 = arith.constant 0 : i32
    %c0_i32_1 = arith.constant 0 : i32
    return %c0_i32, %c0_i32_0 : i32, i32
  }
  func.func @transform_2(%arg0: i32) -> (i32, i32) {
    %c0_i32 = arith.constant 0 : i32
    %c0_i32_0 = arith.constant 0 : i32
    %c0_i32_1 = arith.constant 0 : i32
    return %c0_i32, %c0_i32_0 : i32, i32
  }
  func.func @transform_3(%arg0: i32) -> (i32, i32) {
    %c0_i32 = arith.constant 0 : i32
    %c0_i32_0 = arith.constant 0 : i32
    %c0_i32_1 = arith.constant 0 : i32
    return %c0_i32, %c0_i32_0 : i32, i32
  }
  func.func @transform_4(%arg0: i32) -> (i32, i32) {
    %c0_i32 = arith.constant 0 : i32
    %c0_i32_0 = arith.constant 0 : i32
    %c0_i32_1 = arith.constant 0 : i32
    return %c0_i32, %c0_i32_0 : i32, i32
  }
  func.func @transform_5(%arg0: i32) -> (i32, i32) {
    %c0_i32 = arith.constant 0 : i32
    %c0_i32_0 = arith.constant 0 : i32
    %c0_i32_1 = arith.constant 0 : i32
    return %c0_i32, %c0_i32_0 : i32, i32
  }
  func.func @transform_6(%arg0: i32) -> (i32, i32) {
    %c0_i32 = arith.constant 0 : i32
    %c0_i32_0 = arith.constant 0 : i32
    %c0_i32_1 = arith.constant 0 : i32
    return %c0_i32, %c0_i32_0 : i32, i32
  }
  func.func @transform_7(%arg0: i32) -> (i32, i32) {
    %c0_i32 = arith.constant 0 : i32
    %c0_i32_0 = arith.constant 0 : i32
    %c0_i32_1 = arith.constant 0 : i32
    return %c0_i32, %c0_i32_0 : i32, i32
  }
  func.func @transform_8(%arg0: i32) -> (i32, i32) {
    %c0_i32 = arith.constant 0 : i32
    %c0_i32_0 = arith.constant 0 : i32
    %c0_i32_1 = arith.constant 0 : i32
    return %c0_i32, %c0_i32_0 : i32, i32
  }
  func.func @transform_9(%arg0: i32) -> (i32, i32) {
    %c0_i32 = arith.constant 0 : i32
    %c0_i32_0 = arith.constant 0 : i32
    return %arg0, %c0_i32 : i32, i32
  }
}

</mosaic_0001>

<llo_original>
// kernel: discriminator_forward.1
$region0: #{discriminator_forward.1}
  #allocation0 [shape = 'u32[]', space=smem, size = 0x4, offset = 0x4, fixed_abs, tag = 'smem constant byte address 0x4 - core index']
  #allocation1 [shape = 'u32[144,128]{1,0:T(1,128)}', space=vmem, size = 0x12000, scoped, tag = 'internal scratch']
  %s0 = inlined_call_operand.vmem [shape: f32[16,32], index: 0, kind: input, shape index: {}]
  %s1 = inlined_call_operand.hbm [shape: f32[32,128], index: 1, kind: input, shape index: {}]
  %s2 = inlined_call_operand.vmem [shape: f32[1,128], index: 2, kind: input, shape index: {}]
  %s3 = inlined_call_operand.vmem [shape: f32[128,128], index: 3, kind: input, shape index: {}]
  %s4 = inlined_call_operand.vmem [shape: f32[1,128], index: 4, kind: input, shape index: {}]
  %s5 = inlined_call_operand.hbm [shape: f32[128,128], index: 5, kind: input, shape index: {}]
  %s6 = inlined_call_operand.vmem [shape: f32[1,128], index: 6, kind: input, shape index: {}]
  %s7 = inlined_call_operand.vmem [shape: f32[128,8], index: 7, kind: input, shape index: {}]
  %s8 = inlined_call_operand.vmem [shape: f32[1,8], index: 8, kind: input, shape index: {}]
  %s9 = inlined_call_operand.vmem [shape: f32[16,8], index: 9, kind: output, shape index: {}]
  %s10 = sld [smem:[#allocation0]]
  $region54: #{discriminator_forward.1} parent=0
    _
  %s12 = ssub.s32 1, %s10
  %s13 = scalar_select 0, %s12, %s10
  $region1: #{discriminator_forward.1} parent=0
    #allocation2 [shape = 'u8[16384]{0}', space=vmem, size = 0x4000, scoped, tag = 'input window, operand 1, single buffered']
    #allocation3 [shape = 's32[1]{0}', space=sflag, size = 0x4, scoped, tag = 'scoped memory for discriminator_forward.1']
    #allocation4 [shape = 'u8[65536]{0}', space=vmem, size = 0x10000, scoped, tag = 'input window, operand 5, single buffered']
    #allocation5 [shape = 's32[1]{0}', space=sflag, size = 0x4, scoped, tag = 'scoped memory for discriminator_forward.1']
    %14 = vsyncpa [#allocation3], 0
    %15 = vsyncpa [#allocation5], 0
    // Predicated region
    $region2: #{discriminator_forward.1} parent=1 // pred_check
      _
    $region3: #{discriminator_forward.1} parent=1 // pred_check_branch
      %17 = sbr.rel (0) target = $region5
    $region4: #{discriminator_forward.1} parent=1 // pred_region
      _
    $region5: #{discriminator_forward.1} parent=1 // pred_fallthru
      _
    // Predicated region
    $region6: #{discriminator_forward.1} parent=1 // pred_check
      _
    $region7: #{discriminator_forward.1} parent=1 // pred_check_branch
      %19 = sbr.rel (0) target = $region9
    $region8: #{discriminator_forward.1} parent=1 // pred_region
      %s21 = ssub.s32 512, 512
      %22 = vsyncadd [#allocation3], %s21
      %s23 = sshll.u32 [#allocation2], 4
      %s24 = int_to_ptr.vmem [resolvable:$true] %s23
      %29 = dma.hbm_to_vmem [thread:$0]  %s1, 512, %s24, [#allocation3], 128, 128, 8
    $region9: #{discriminator_forward.1} parent=1 // pred_fallthru
      _
    // Predicated region
    $region10: #{discriminator_forward.1} parent=1 // pred_check
      _
    $region11: #{discriminator_forward.1} parent=1 // pred_check_branch
      %31 = sbr.rel (0) target = $region13
    $region12: #{discriminator_forward.1} parent=1 // pred_region
      _
    $region13: #{discriminator_forward.1} parent=1 // pred_fallthru
      _
    // Predicated region
    $region14: #{discriminator_forward.1} parent=1 // pred_check
      _
    $region15: #{discriminator_forward.1} parent=1 // pred_check_branch
      %33 = sbr.rel (0) target = $region17
    $region16: #{discriminator_forward.1} parent=1 // pred_region
      _
    $region17: #{discriminator_forward.1} parent=1 // pred_fallthru
      _
    // Predicated region
    $region18: #{discriminator_forward.1} parent=1 // pred_check
      _
    $region19: #{discriminator_forward.1} parent=1 // pred_check_branch
      %35 = sbr.rel (0) target = $region21
    $region20: #{discriminator_forward.1} parent=1 // pred_region
      _
    $region21: #{discriminator_forward.1} parent=1 // pred_fallthru
      _
    // Predicated region
    $region22: #{discriminator_forward.1} parent=1 // pred_check
      _
    $region23: #{discriminator_forward.1} parent=1 // pred_check_branch
      %37 = sbr.rel (0) target = $region25
    $region24: #{discriminator_forward.1} parent=1 // pred_region
      %s39 = ssub.s32 2048, 2048
      %40 = vsyncadd [#allocation5], %s39
      %s41 = sshll.u32 [#allocation4], 4
      %s42 = int_to_ptr.vmem [resolvable:$true] %s41
      %47 = dma.hbm_to_vmem [thread:$0]  %s5, 2048, %s42, [#allocation5], 128, 128, 8
    $region25: #{discriminator_forward.1} parent=1 // pred_fallthru
      _
    // Predicated region
    $region26: #{discriminator_forward.1} parent=1 // pred_check
      _
    $region27: #{discriminator_forward.1} parent=1 // pred_check_branch
      %49 = sbr.rel (0) target = $region29
    $region28: #{discriminator_forward.1} parent=1 // pred_region
      _
    $region29: #{discriminator_forward.1} parent=1 // pred_fallthru
      _
    // Predicated region
    $region30: #{discriminator_forward.1} parent=1 // pred_check
      _
    $region31: #{discriminator_forward.1} parent=1 // pred_check_branch
      %51 = sbr.rel (0) target = $region33
    $region32: #{discriminator_forward.1} parent=1 // pred_region
      _
    $region33: #{discriminator_forward.1} parent=1 // pred_fallthru
      _
    // Predicated region
    $region34: #{discriminator_forward.1} parent=1 // pred_check
      _
    $region35: #{discriminator_forward.1} parent=1 // pred_check_branch
      %53 = sbr.rel (0) target = $region37
    $region36: #{discriminator_forward.1} parent=1 // pred_region
      _
    $region37: #{discriminator_forward.1} parent=1 // pred_fallthru
      _
    // Predicated region
    $region38: #{discriminator_forward.1} parent=1 // pred_check
      _
    $region39: #{discriminator_forward.1} parent=1 // pred_check_branch
      %55 = sbr.rel (0) target = $region41
    $region40: #{discriminator_forward.1} parent=1 // pred_region
      %56 = dma.done [#allocation3], 512
    $region41: #{discriminator_forward.1} parent=1 // pred_fallthru
      _
    // Predicated region
    $region42: #{discriminator_forward.1} parent=1 // pred_check
      _
    $region43: #{discriminator_forward.1} parent=1 // pred_check_branch
      %58 = sbr.rel (0) target = $region45
    $region44: #{discriminator_forward.1} parent=1 // pred_region
      %59 = dma.done [#allocation5], 2048
    $region45: #{discriminator_forward.1} parent=1 // pred_fallthru
      _
    %v60 = vld [vmem:[%s0] sm:$0xff]
    %v61 = vld [vmem:[%s0 + $0x8] sm:$0xff]
    %v62 = vld [vmem:[#allocation2] sm:$0xff]
    %v63 = vld [vmem:[#allocation2 + $0x8] sm:$0xff]
    %v64 = vld [vmem:[#allocation2 + $0x10] sm:$0xff]
    %v65 = vld [vmem:[#allocation2 + $0x18] sm:$0xff]
    %v66 = vld [vmem:[%s2] sm:$0x1]
    %v68 = vlaneseq
    %v69 = vshrl.u32 %v68, 7
    %v70 = vsub.s32 0, %v69
    %v71 = vrot.slane %v66, %v70
    %vm73 = vcmask 261120
    %v75 = vsel %vm73, %v60, 0
    %v78 = vsel %vm73, %v61, 0
    %80 = vmatprep.subr.mxu0 0.0
    %81 = vmatpush1.msra.mxu0 %v62
    %82 = vmatprep.subr.mxu0 0.0
    %83 = vmatpush1.msra.mxu0 %v63
    %84 = vmatprep.subr.mxu0 0.0
    %85 = vmatpush1.msra.mxu0 %v64
    %86 = vmatprep.subr.mxu0 0.0
    %87 = vmatpush1.msra.mxu0 %v65
    %88 = vmatprep.subr.mxu0 0.0
    %89 = vmatpush1.msra.mxu0 0.0
    %90 = vmatprep.subr.mxu0 0.0
    %91 = vmatpush1.msra.mxu0 0.0
    %92 = vmatprep.subr.mxu0 0.0
    %93 = vmatpush1.msra.mxu0 0.0
    %94 = vmatprep.subr.mxu0 0.0
    %95 = vmatpush1.msra.mxu0 0.0
    %96 = vmatprep.subr.mxu0 0.0
    %97 = vmatpush1.msra.mxu0 0.0
    %98 = vmatprep.subr.mxu0 0.0
    %99 = vmatpush1.msra.mxu0 0.0
    %100 = vmatprep.subr.mxu0 0.0
    %101 = vmatpush1.msra.mxu0 0.0
    %102 = vmatprep.subr.mxu0 0.0
    %103 = vmatpush1.msra.mxu0 0.0
    %104 = vmatprep.subr.mxu0 0.0
    %105 = vmatpush1.msra.mxu0 0.0
    %106 = vmatprep.subr.mxu0 0.0
    %107 = vmatpush1.msra.mxu0 0.0
    %108 = vmatprep.subr.mxu0 0.0
    %109 = vmatpush1.msra.mxu0 0.0
    %110 = vmatprep.subr.mxu0 0.0
    %111 = vmatpush1.msra.mxu0 0.0
    %112 = vmatprep.subr.mxu0 0.0
    %113 = vmatpush1.msra.mxu0 0.0
    %114 = vmatprep.subr.mxu0 0.0
    %115 = vmatpush1.msra.mxu0 0.0
    %116 = vmatprep.subr.mxu0 0.0
    %117 = vmatpush1.msra.mxu0 0.0
    %118 = vmatprep.subr.mxu0 0.0
    %119 = vmatpush1.msra.mxu0 0.0
    %120 = vmatprep.subr.mxu0 0.0
    %121 = vmatpush1.msra.mxu0 0.0
    %122 = vmatprep.subr.mxu0 0.0
    %123 = vmatpush1.msra.mxu0 0.0
    %124 = vmatprep.subr.mxu0 0.0
    %125 = vmatpush1.msra.mxu0 0.0
    %126 = vmatprep.subr.mxu0 0.0
    %127 = vmatpush1.msra.mxu0 0.0
    %128 = vmatprep.subr.mxu0 0.0
    %129 = vmatpush1.msra.mxu0 0.0
    %130 = vmatprep.subr.mxu0 0.0
    %131 = vmatpush1.msra.mxu0 0.0
    %132 = vmatprep.subr.mxu0 0.0
    %133 = vmatpush1.msra.mxu0 0.0
    %134 = vmatprep.subr.mxu0 0.0
    %135 = vmatpush1.msra.mxu0 0.0
    %136 = vmatprep.subr.mxu0 0.0
    %137 = vmatpush1.msra.mxu0 0.0
    %138 = vmatprep.subr.mxu0 0.0
    %139 = vmatpush1.msra.mxu0 0.0
    %140 = vmatprep.subr.mxu0 0.0
    %141 = vmatpush1.msra.mxu0 0.0
    %142 = vmatprep.subr.mxu0 0.0
    %143 = vmatpush1.msra.mxu0 0.0
    %144 = vmatprep.mubr.f32.mxu0 0.0
    %145 = vmatmul.mubr.f32.gmra.mrb[0].mxu0 %v75
    %v146 = vpop.f32.mrb[0].mxu0
    %v147 = vadd.f32 %v71, %v146
    %v148 = vpop.f32.mrb[0].mxu0
    %149 = vmatprep.mubr.f32.mxu0 0.0
    %150 = vmatmul.mubr.f32.gmra.mrb[0].mxu0 %v78
    %v151 = vpop.f32.mrb[0].mxu0
    %v152 = vadd.f32 %v71, %v151
    %v153 = vpop.f32.mrb[0].mxu0
    %154 = vdwg.mxu0
    %v155 = vmul.f32 %v147, 0.4
    %v156 = vmul.f32 %v152, 0.4
    %v157 = vmax.f32 %v147, %v155
    %v158 = vmax.f32 %v152, %v156
    %v159 = vld [vmem:[%s3] sm:$0xff]
    %v160 = vld [vmem:[%s3 + $0x8] sm:$0xff]
    %v161 = vld [vmem:[%s3 + $0x10] sm:$0xff]
    %v162 = vld [vmem:[%s3 + $0x18] sm:$0xff]
    %v163 = vld [vmem:[%s3 + $0x20] sm:$0xff]
    %v164 = vld [vmem:[%s3 + $0x28] sm:$0xff]
    %v165 = vld [vmem:[%s3 + $0x30] sm:$0xff]
    %v166 = vld [vmem:[%s3 + $0x38] sm:$0xff]
    %v167 = vld [vmem:[%s3 + $0x40] sm:$0xff]
    %v168 = vld [vmem:[%s3 + $0x48] sm:$0xff]
    %v169 = vld [vmem:[%s3 + $0x50] sm:$0xff]
    %v170 = vld [vmem:[%s3 + $0x58] sm:$0xff]
    %v171 = vld [vmem:[%s3 + $0x60] sm:$0xff]
    %v172 = vld [vmem:[%s3 + $0x68] sm:$0xff]
    %v173 = vld [vmem:[%s3 + $0x70] sm:$0xff]
    %v174 = vld [vmem:[%s3 + $0x78] sm:$0xff]
    %v175 = vld [vmem:[%s4] sm:$0x1]
    %v177 = vlaneseq
    %v178 = vshrl.u32 %v177, 7
    %v179 = vsub.s32 0, %v178
    %v180 = vrot.slane %v175, %v179
    %182 = vmatprep.subr.mxu0 0.0
    %183 = vmatpush1.msra.mxu0 %v159
    %184 = vmatprep.subr.mxu0 0.0
    %185 = vmatpush1.msra.mxu0 %v160
    %186 = vmatprep.subr.mxu0 0.0
    %187 = vmatpush1.msra.mxu0 %v161
    %188 = vmatprep.subr.mxu0 0.0
    %189 = vmatpush1.msra.mxu0 %v162
    %190 = vmatprep.subr.mxu0 0.0
    %191 = vmatpush1.msra.mxu0 %v163
    %192 = vmatprep.subr.mxu0 0.0
    %193 = vmatpush1.msra.mxu0 %v164
    %194 = vmatprep.subr.mxu0 0.0
    %195 = vmatpush1.msra.mxu0 %v165
    %196 = vmatprep.subr.mxu0 0.0
    %197 = vmatpush1.msra.mxu0 %v166
    %198 = vmatprep.subr.mxu0 0.0
    %199 = vmatpush1.msra.mxu0 %v167
    %200 = vmatprep.subr.mxu0 0.0
    %201 = vmatpush1.msra.mxu0 %v168
    %202 = vmatprep.subr.mxu0 0.0
    %203 = vmatpush1.msra.mxu0 %v169
    %204 = vmatprep.subr.mxu0 0.0
    %205 = vmatpush1.msra.mxu0 %v170
    %206 = vmatprep.subr.mxu0 0.0
    %207 = vmatpush1.msra.mxu0 %v171
    %208 = vmatprep.subr.mxu0 0.0
    %209 = vmatpush1.msra.mxu0 %v172
    %210 = vmatprep.subr.mxu0 0.0
    %211 = vmatpush1.msra.mxu0 %v173
    %212 = vmatprep.subr.mxu0 0.0
    %213 = vmatpush1.msra.mxu0 %v174
    %214 = vmatprep.subr.mxu0 0.0
    %215 = vmatpush1.msra.mxu0 0.0
    %216 = vmatprep.subr.mxu0 0.0
    %217 = vmatpush1.msra.mxu0 0.0
    %218 = vmatprep.subr.mxu0 0.0
    %219 = vmatpush1.msra.mxu0 0.0
    %220 = vmatprep.subr.mxu0 0.0
    %221 = vmatpush1.msra.mxu0 0.0
    %222 = vmatprep.subr.mxu0 0.0
    %223 = vmatpush1.msra.mxu0 0.0
    %224 = vmatprep.subr.mxu0 0.0
    %225 = vmatpush1.msra.mxu0 0.0
    %226 = vmatprep.subr.mxu0 0.0
    %227 = vmatpush1.msra.mxu0 0.0
    %228 = vmatprep.subr.mxu0 0.0
    %229 = vmatpush1.msra.mxu0 0.0
    %230 = vmatprep.subr.mxu0 0.0
    %231 = vmatpush1.msra.mxu0 0.0
    %232 = vmatprep.subr.mxu0 0.0
    %233 = vmatpush1.msra.mxu0 0.0
    %234 = vmatprep.subr.mxu0 0.0
    %235 = vmatpush1.msra.mxu0 0.0
    %236 = vmatprep.subr.mxu0 0.0
    %237 = vmatpush1.msra.mxu0 0.0
    %238 = vmatprep.subr.mxu0 0.0
    %239 = vmatpush1.msra.mxu0 0.0
    %240 = vmatprep.subr.mxu0 0.0
    %241 = vmatpush1.msra.mxu0 0.0
    %242 = vmatprep.subr.mxu0 0.0
    %243 = vmatpush1.msra.mxu0 0.0
    %244 = vmatprep.subr.mxu0 0.0
    %245 = vmatpush1.msra.mxu0 0.0
    %246 = vmatprep.mubr.f32.mxu0 0.0
    %247 = vmatmul.mubr.f32.gmra.mrb[0].mxu0 %v157
    %v248 = vpop.f32.mrb[0].mxu0
    %v249 = vadd.f32 %v180, %v248
    %v250 = vpop.f32.mrb[0].mxu0
    %251 = vmatprep.mubr.f32.mxu0 0.0
    %252 = vmatmul.mubr.f32.gmra.mrb[0].mxu0 %v158
    %v253 = vpop.f32.mrb[0].mxu0
    %v254 = vadd.f32 %v180, %v253
    %v255 = vpop.f32.mrb[0].mxu0
    %256 = vdwg.mxu0
    %v257 = vmul.f32 %v249, 0.4
    %v258 = vmul.f32 %v254, 0.4
    %v259 = vmax.f32 %v249, %v257
    %v260 = vmax.f32 %v254, %v258
    %v261 = vld [vmem:[#allocation4] sm:$0xff]
    %v262 = vld [vmem:[#allocation4 + $0x8] sm:$0xff]
    %v263 = vld [vmem:[#allocation4 + $0x10] sm:$0xff]
    %v264 = vld [vmem:[#allocation4 + $0x18] sm:$0xff]
    %v265 = vld [vmem:[#allocation4 + $0x20] sm:$0xff]
    %v266 = vld [vmem:[#allocation4 + $0x28] sm:$0xff]
    %v267 = vld [vmem:[#allocation4 + $0x30] sm:$0xff]
    %v268 = vld [vmem:[#allocation4 + $0x38] sm:$0xff]
    %v269 = vld [vmem:[#allocation4 + $0x40] sm:$0xff]
    %v270 = vld [vmem:[#allocation4 + $0x48] sm:$0xff]
    %v271 = vld [vmem:[#allocation4 + $0x50] sm:$0xff]
    %v272 = vld [vmem:[#allocation4 + $0x58] sm:$0xff]
    %v273 = vld [vmem:[#allocation4 + $0x60] sm:$0xff]
    %v274 = vld [vmem:[#allocation4 + $0x68] sm:$0xff]
    %v275 = vld [vmem:[#allocation4 + $0x70] sm:$0xff]
    %v276 = vld [vmem:[#allocation4 + $0x78] sm:$0xff]
    %v277 = vld [vmem:[%s6] sm:$0x1]
    %v279 = vlaneseq
    %v280 = vshrl.u32 %v279, 7
    %v281 = vsub.s32 0, %v280
    %v282 = vrot.slane %v277, %v281
    %284 = vmatprep.subr.mxu0 0.0
    %285 = vmatpush1.msra.mxu0 %v261
    %286 = vmatprep.subr.mxu0 0.0
    %287 = vmatpush1.msra.mxu0 %v262
    %288 = vmatprep.subr.mxu0 0.0
    %289 = vmatpush1.msra.mxu0 %v263
    %290 = vmatprep.subr.mxu0 0.0
    %291 = vmatpush1.msra.mxu0 %v264
    %292 = vmatprep.subr.mxu0 0.0
    %293 = vmatpush1.msra.mxu0 %v265
    %294 = vmatprep.subr.mxu0 0.0
    %295 = vmatpush1.msra.mxu0 %v266
    %296 = vmatprep.subr.mxu0 0.0
    %297 = vmatpush1.msra.mxu0 %v267
    %298 = vmatprep.subr.mxu0 0.0
    %299 = vmatpush1.msra.mxu0 %v268
    %300 = vmatprep.subr.mxu0 0.0
    %301 = vmatpush1.msra.mxu0 %v269
    %302 = vmatprep.subr.mxu0 0.0
    %303 = vmatpush1.msra.mxu0 %v270
    %304 = vmatprep.subr.mxu0 0.0
    %305 = vmatpush1.msra.mxu0 %v271
    %306 = vmatprep.subr.mxu0 0.0
    %307 = vmatpush1.msra.mxu0 %v272
    %308 = vmatprep.subr.mxu0 0.0
    %309 = vmatpush1.msra.mxu0 %v273
    %310 = vmatprep.subr.mxu0 0.0
    %311 = vmatpush1.msra.mxu0 %v274
    %312 = vmatprep.subr.mxu0 0.0
    %313 = vmatpush1.msra.mxu0 %v275
    %314 = vmatprep.subr.mxu0 0.0
    %315 = vmatpush1.msra.mxu0 %v276
    %316 = vmatprep.subr.mxu0 0.0
    %317 = vmatpush1.msra.mxu0 0.0
    %318 = vmatprep.subr.mxu0 0.0
    %319 = vmatpush1.msra.mxu0 0.0
    %320 = vmatprep.subr.mxu0 0.0
    %321 = vmatpush1.msra.mxu0 0.0
    %322 = vmatprep.subr.mxu0 0.0
    %323 = vmatpush1.msra.mxu0 0.0
    %324 = vmatprep.subr.mxu0 0.0
    %325 = vmatpush1.msra.mxu0 0.0
    %326 = vmatprep.subr.mxu0 0.0
    %327 = vmatpush1.msra.mxu0 0.0
    %328 = vmatprep.subr.mxu0 0.0
    %329 = vmatpush1.msra.mxu0 0.0
    %330 = vmatprep.subr.mxu0 0.0
    %331 = vmatpush1.msra.mxu0 0.0
    %332 = vmatprep.subr.mxu0 0.0
    %333 = vmatpush1.msra.mxu0 0.0
    %334 = vmatprep.subr.mxu0 0.0
    %335 = vmatpush1.msra.mxu0 0.0
    %336 = vmatprep.subr.mxu0 0.0
    %337 = vmatpush1.msra.mxu0 0.0
    %338 = vmatprep.subr.mxu0 0.0
    %339 = vmatpush1.msra.mxu0 0.0
    %340 = vmatprep.subr.mxu0 0.0
    %341 = vmatpush1.msra.mxu0 0.0
    %342 = vmatprep.subr.mxu0 0.0
    %343 = vmatpush1.msra.mxu0 0.0
    %344 = vmatprep.subr.mxu0 0.0
    %345 = vmatpush1.msra.mxu0 0.0
    %346 = vmatprep.subr.mxu0 0.0
    %347 = vmatpush1.msra.mxu0 0.0
    %348 = vmatprep.mubr.f32.mxu0 0.0
    %349 = vmatmul.mubr.f32.gmra.mrb[0].mxu0 %v259
    %v350 = vpop.f32.mrb[0].mxu0
    %v351 = vadd.f32 %v282, %v350
    %v352 = vpop.f32.mrb[0].mxu0
    %353 = vmatprep.mubr.f32.mxu0 0.0
    %354 = vmatmul.mubr.f32.gmra.mrb[0].mxu0 %v260
    %v355 = vpop.f32.mrb[0].mxu0
    %v356 = vadd.f32 %v282, %v355
    %v357 = vpop.f32.mrb[0].mxu0
    %358 = vdwg.mxu0
    %v359 = vmul.f32 %v351, 0.4
    %v360 = vmul.f32 %v356, 0.4
    %v361 = vmax.f32 %v351, %v359
    %v362 = vmax.f32 %v356, %v360
    %v363 = vld [vmem:[%s7] sm:$0xff]
    %v364 = vld [vmem:[%s7 + $0x8] sm:$0xff]
    %v365 = vld [vmem:[%s7 + $0x10] sm:$0xff]
    %v366 = vld [vmem:[%s7 + $0x18] sm:$0xff]
    %v367 = vld [vmem:[%s7 + $0x20] sm:$0xff]
    %v368 = vld [vmem:[%s7 + $0x28] sm:$0xff]
    %v369 = vld [vmem:[%s7 + $0x30] sm:$0xff]
    %v370 = vld [vmem:[%s7 + $0x38] sm:$0xff]
    %v371 = vld [vmem:[%s7 + $0x40] sm:$0xff]
    %v372 = vld [vmem:[%s7 + $0x48] sm:$0xff]
    %v373 = vld [vmem:[%s7 + $0x50] sm:$0xff]
    %v374 = vld [vmem:[%s7 + $0x58] sm:$0xff]
    %v375 = vld [vmem:[%s7 + $0x60] sm:$0xff]
    %v376 = vld [vmem:[%s7 + $0x68] sm:$0xff]
    %v377 = vld [vmem:[%s7 + $0x70] sm:$0xff]
    %v378 = vld [vmem:[%s7 + $0x78] sm:$0xff]
    %v379 = vld [vmem:[%s8] sm:$0x1]
    %v381 = vlaneseq
    %v382 = vshrl.u32 %v381, 7
    %v383 = vsub.s32 0, %v382
    %v384 = vrot.slane %v379, %v383
    %386 = vmatprep.subr.mxu0 0.0
    %387 = vmatpush1.msra.mxu0 %v363
    %388 = vmatprep.subr.mxu0 0.0
    %389 = vmatpush1.msra.mxu0 %v364
    %390 = vmatprep.subr.mxu0 0.0
    %391 = vmatpush1.msra.mxu0 %v365
    %392 = vmatprep.subr.mxu0 0.0
    %393 = vmatpush1.msra.mxu0 %v366
    %394 = vmatprep.subr.mxu0 0.0
    %395 = vmatpush1.msra.mxu0 %v367
    %396 = vmatprep.subr.mxu0 0.0
    %397 = vmatpush1.msra.mxu0 %v368
    %398 = vmatprep.subr.mxu0 0.0
    %399 = vmatpush1.msra.mxu0 %v369
    %400 = vmatprep.subr.mxu0 0.0
    %401 = vmatpush1.msra.mxu0 %v370
    %402 = vmatprep.subr.mxu0 0.0
    %403 = vmatpush1.msra.mxu0 %v371
    %404 = vmatprep.subr.mxu0 0.0
    %405 = vmatpush1.msra.mxu0 %v372
    %406 = vmatprep.subr.mxu0 0.0
    %407 = vmatpush1.msra.mxu0 %v373
    %408 = vmatprep.subr.mxu0 0.0
    %409 = vmatpush1.msra.mxu0 %v374
    %410 = vmatprep.subr.mxu0 0.0
    %411 = vmatpush1.msra.mxu0 %v375
    %412 = vmatprep.subr.mxu0 0.0
    %413 = vmatpush1.msra.mxu0 %v376
    %414 = vmatprep.subr.mxu0 0.0
    %415 = vmatpush1.msra.mxu0 %v377
    %416 = vmatprep.subr.mxu0 0.0
    %417 = vmatpush1.msra.mxu0 %v378
    %418 = vmatprep.subr.mxu0 0.0
    %419 = vmatpush1.msra.mxu0 0.0
    %420 = vmatprep.subr.mxu0 0.0
    %421 = vmatpush1.msra.mxu0 0.0
    %422 = vmatprep.subr.mxu0 0.0
    %423 = vmatpush1.msra.mxu0 0.0
    %424 = vmatprep.subr.mxu0 0.0
    %425 = vmatpush1.msra.mxu0 0.0
    %426 = vmatprep.subr.mxu0 0.0
    %427 = vmatpush1.msra.mxu0 0.0
    %428 = vmatprep.subr.mxu0 0.0
    %429 = vmatpush1.msra.mxu0 0.0
    %430 = vmatprep.subr.mxu0 0.0
    %431 = vmatpush1.msra.mxu0 0.0
    %432 = vmatprep.subr.mxu0 0.0
    %433 = vmatpush1.msra.mxu0 0.0
    %434 = vmatprep.subr.mxu0 0.0
    %435 = vmatpush1.msra.mxu0 0.0
    %436 = vmatprep.subr.mxu0 0.0
    %437 = vmatpush1.msra.mxu0 0.0
    %438 = vmatprep.subr.mxu0 0.0
    %439 = vmatpush1.msra.mxu0 0.0
    %440 = vmatprep.subr.mxu0 0.0
    %441 = vmatpush1.msra.mxu0 0.0
    %442 = vmatprep.subr.mxu0 0.0
    %443 = vmatpush1.msra.mxu0 0.0
    %444 = vmatprep.subr.mxu0 0.0
    %445 = vmatpush1.msra.mxu0 0.0
    %446 = vmatprep.subr.mxu0 0.0
    %447 = vmatpush1.msra.mxu0 0.0
    %448 = vmatprep.subr.mxu0 0.0
    %449 = vmatpush1.msra.mxu0 0.0
    %450 = vmatprep.mubr.f32.mxu0 0.0
    %451 = vmatmul.mubr.f32.gmra.mrb[0].mxu0 %v361
    %v452 = vpop.f32.mrb[0].mxu0
    %v453 = vadd.f32 %v384, %v452
    %v454 = vpop.f32.mrb[0].mxu0
    %455 = vmatprep.mubr.f32.mxu0 0.0
    %456 = vmatmul.mubr.f32.gmra.mrb[0].mxu0 %v362
    %v457 = vpop.f32.mrb[0].mxu0
    %v458 = vadd.f32 %v384, %v457
    %v459 = vpop.f32.mrb[0].mxu0
    %460 = vdwg.mxu0
    %v461 = vand.u32 2147483647, %v453
    %v462 = vand.u32 2147483647, %v458
    %v463 = vsub.f32 0.0, %v461
    %v464 = vsub.f32 0.0, %v462
    %v465 = vmul.f32 %v463, 1.442695
    %v466 = vpow.pop %v465
    %v467 = vmul.f32 %v464, 1.442695
    %v468 = vpow.pop %v467
    %v469 = vadd.f32 %v466, 1.0
    %v470 = vadd.f32 %v468, 1.0
    %v471 = vrcp.pop %v469
    %v472 = vrcp.pop %v470
    %v473 = vmul.f32 %v469, %v471
    %v474 = vmul.f32 %v470, %v472
    %v475 = vsub.f32 2.0, %v473
    %v476 = vsub.f32 2.0, %v474
    %v477 = vmul.f32 %v471, %v475
    %v478 = vmul.f32 %v472, %v476
    %vm479 = vcmp.ge.f32.partialorder %v453, 0.0
    %vm480 = vcmp.ge.f32.partialorder %v458, 0.0
    %v481 = vmul.f32 %v466, %v477
    %v482 = vmul.f32 %v468, %v478
    %v483 = vsel %vm479, %v477, %v481
    %v484 = vsel %vm480, %v478, %v482
    %vm485 = vcmask 64512
    %486 = vst.msk [vmem:[%s9] sm:$0xff] %vm485, %v483
    %487 = vst.msk [vmem:[%s9 + $0x8] sm:$0xff] %vm485, %v484
    // Predicated region
    $region46: #{discriminator_forward.1} parent=1 // pred_check
      _
    $region47: #{discriminator_forward.1} parent=1 // pred_check_branch
      %489 = sbr.rel (0) target = $region49
    $region48: #{discriminator_forward.1} parent=1 // pred_region
      _
    $region49: #{discriminator_forward.1} parent=1 // pred_fallthru
      _
    // Predicated region
    $region50: #{discriminator_forward.1} parent=1 // pred_check
      _
    $region51: #{discriminator_forward.1} parent=1 // pred_check_branch
      %491 = sbr.rel (0) target = $region53
    $region52: #{discriminator_forward.1} parent=1 // pred_region
      _
    $region53: #{discriminator_forward.1} parent=1 // pred_fallthru
      _
    %492 = vsyncpa [#allocation3], 1
    %493 = vsyncpa [#allocation5], 1

</llo_original>
